<compile_context>
chip_gen: v7x
topology: tpu7x:2x2x1
jax: 0.10.0
libtpu: 0.0.40
codegen_flags: <defaults>
</compile_context>

<pallas_src>
import functools

import jax
import jax.numpy as jnp
from jax.experimental import pallas as pl
from jax.experimental.pallas import tpu as pltpu

LN_EPS = 1e-5
BLOCKS_PER_CALL = 2      # transformer blocks fused per pallas_call
IMAGES_PER_STEP = 2      # max images per grid step (amortizes MXU fill/drain)
W_PER_BLOCK = 11         # weight refs per transformer block


def _vmem_limit_bytes():
    # Per-generation VMEM budget: capacity - 8 MiB headroom, capped at 100 MiB.
    # -> ~56 MiB on v7x (64 MiB physical), ~100 MiB on v5e/v6e (128 MiB).
    try:
        cap = int(pltpu.get_tpu_info().vmem_capacity_bytes)
    except Exception:
        cap = 64 * 1024 * 1024
    return max(min(cap - 8 * 1024 * 1024, 100 * 1024 * 1024), 32 * 1024 * 1024)


def _layernorm(x, gamma, beta):
    # x: (R, C), gamma/beta: (1, C). Biased variance, eps=1e-5 (PyTorch default).
    mean = jnp.mean(x, axis=-1, keepdims=True)
    xc = x - mean
    var = jnp.mean(xc * xc, axis=-1, keepdims=True)
    return xc * jax.lax.rsqrt(var + LN_EPS) * gamma + beta


def _wspec(shape):
    # Constant-index-map weight spec: same block every grid step, single buffer.
    n = len(shape)
    return pl.BlockSpec(shape, lambda b: (0,) * n, pipeline_mode=pl.Buffered(1))


# --------------------------------------------------------------------------
# Patch embedding (conv with kernel=stride=patch  ==  unfold + matmul)
# --------------------------------------------------------------------------
def _patch_embed_kernel(p_ref, w_ref, b_ref, o_ref):
    p = p_ref[0].astype(jnp.bfloat16)                          # (P, Dp)
    emb = jnp.dot(p, w_ref[...],
                  preferred_element_type=jnp.float32) + b_ref[...]
    o_ref[0] = emb.astype(o_ref.dtype)


def patch_embed_forward(patches, w_bf16, bias):
    B, P, Dp = patches.shape
    E = w_bf16.shape[1]
    return pl.pallas_call(
        _patch_embed_kernel,
        out_shape=jax.ShapeDtypeStruct((B, P, E), jnp.float32),
        grid_spec=pltpu.PrefetchScalarGridSpec(
            num_scalar_prefetch=0,
            grid=(B,),
            in_specs=[pl.BlockSpec((1, P, Dp), lambda b: (b, 0, 0)),
                      _wspec((Dp, E)),
                      _wspec((1, E))],
            out_specs=pl.BlockSpec((1, P, E), lambda b: (b, 0, 0)),
        ),
        compiler_params=pltpu.CompilerParams(
            dimension_semantics=("parallel",),
            vmem_limit_bytes=_vmem_limit_bytes()),
    )(patches, w_bf16, bias)


# --------------------------------------------------------------------------
# Transformer Block(s): LN -> MHSA -> residual -> LN -> MLP(GELU) -> residual
# --------------------------------------------------------------------------
def _block_body(x, num_heads, n_img, n_tok,
                g1, b1, wqkv, wproj, bproj, g2, b2, w1, bf1, w2, bf2):
    # x: (n_img * n_tok, C) f32 residual stream for this grid step.
    R, C = x.shape
    H = num_heads
    Dh = C // H

    # ---- attention branch --------------------------------------------------
    xn1 = _layernorm(x, g1, b1)                                # (R, C) f32
    # Fused lane-dense QKV projection: one (R, C) x (C, 3C) MXU matmul.
    # 1/sqrt(Dh) is pre-folded into the q columns of wqkv.
    qkv = jnp.dot(xn1.astype(jnp.bfloat16), wqkv,
                  preferred_element_type=jnp.float32)          # (R, 3C) f32

    # One-time re-layout to head-major (H, R, Dh): static lane slices stacked
    # along a new leading axis (XLU/copy work with slack; no H-way broadcast).
    def head_major(base):
        return jnp.stack(
            [qkv[:, base + h * Dh: base + (h + 1) * Dh] for h in range(H)],
            axis=0)                                            # (H, R, Dh) f32

    q_all = head_major(0)
    k_all = head_major(C)
    v_all = head_major(2 * C)

    y_parts = []
    for img in range(n_img):                                   # attention is per-image
        if n_img == 1:
            q, k, v = q_all, k_all, v_all
        else:
            lo = img * n_tok
            q = q_all[:, lo:lo + n_tok, :]
            k = k_all[:, lo:lo + n_tok, :]
            v = v_all[:, lo:lo + n_tok, :]
        q = q.astype(jnp.bfloat16)
        k = k.astype(jnp.bfloat16)
        v = v.astype(jnp.bfloat16)

        s = jnp.einsum('hqd,hkd->hqk', q, k,
                       preferred_element_type=jnp.float32)     # (H, N, N) f32
        s = s - jnp.max(s, axis=-1, keepdims=True)
        p = jnp.exp(s)
        p = p * pl.reciprocal(jnp.sum(p, axis=-1, keepdims=True), approx=True)

        o = jnp.einsum('hqk,hkd->hqd', p.astype(jnp.bfloat16), v,
                       preferred_element_type=jnp.float32)     # (H, N, Dh) f32
        # back to token-major (N, C): heads concatenated along lanes so the
        # output projection is one lane-dense matmul (MXU-side head accumulation).
        y_parts.append(jnp.concatenate([o[h] for h in range(H)], axis=-1))

    o_all = y_parts[0] if n_img == 1 else jnp.concatenate(y_parts, axis=0)  # (R, C)
    y = jnp.dot(o_all.astype(jnp.bfloat16), wproj,
                preferred_element_type=jnp.float32) + bproj
    x1 = x + y                                                 # residual 1

    # ---- MLP branch ----------------------------------------------------------
    xn2 = _layernorm(x1, g2, b2)
    h1 = jnp.dot(xn2.astype(jnp.bfloat16), w1,
                 preferred_element_type=jnp.float32) + bf1
    h1 = jax.nn.gelu(h1, approximate=False)                    # exact erf GELU (nn.GELU default)
    h2 = jnp.dot(h1.astype(jnp.bfloat16), w2,
                 preferred_element_type=jnp.float32) + bf2
    return x1 + h2                                             # residual 2


def _blocks_kernel(num_heads, x_ref, *refs):
    o_ref = refs[-1]
    wrefs = refs[:-1]
    n_blocks = len(wrefs) // W_PER_BLOCK
    n_img, n_tok, C = x_ref.shape
    # Merge image tile into the row dim so every dense matmul is (Bt*N, .).
    x = x_ref[...].reshape(n_img * n_tok, C).astype(jnp.float32)
    for i in range(n_blocks):
        w = [r[...] for r in wrefs[i * W_PER_BLOCK:(i + 1) * W_PER_BLOCK]]
        x = _block_body(x, num_heads, n_img, n_tok, *w)
    o_ref[...] = x.reshape(n_img, n_tok, C).astype(o_ref.dtype)


def _images_per_step(B):
    # Widen the per-step tile only when it keeps >= 2 parallel grid steps
    # (so both v7x TensorCores stay busy); always a divisor of B.
    for bt in range(min(IMAGES_PER_STEP, B), 1, -1):
        if B % bt == 0 and B // bt >= 2:
            return bt
    return 1


def blocks_forward(x, block_list, num_heads):
    B, N, C = x.shape
    bt = _images_per_step(B)

    in_specs = [pl.BlockSpec((bt, N, C), lambda b: (b, 0, 0))]
    args = [x]
    for bp in block_list:
        M = bp["w1"].shape[1]
        in_specs += [
            _wspec((1, C)), _wspec((1, C)),                    # norm1
            _wspec((C, 3 * C)),                                # fused qkv (scale folded)
            _wspec((C, C)), _wspec((1, C)),                    # proj
            _wspec((1, C)), _wspec((1, C)),                    # norm2
            _wspec((C, M)), _wspec((1, M)),                    # fc1
            _wspec((M, C)), _wspec((1, C)),                    # fc2
        ]
        args += [bp["g1"], bp["b1"], bp["wqkv"], bp["wproj"], bp["bproj"],
                 bp["g2"], bp["b2"], bp["w1"], bp["bf1"], bp["w2"], bp["bf2"]]

    return pl.pallas_call(
        functools.partial(_blocks_kernel, num_heads),
        out_shape=jax.ShapeDtypeStruct((B, N, C), x.dtype),
        grid_spec=pltpu.PrefetchScalarGridSpec(
            num_scalar_prefetch=0,
            grid=(B // bt,),
            in_specs=in_specs,
            out_specs=pl.BlockSpec((bt, N, C), lambda b: (b, 0, 0)),
        ),
        compiler_params=pltpu.CompilerParams(
            dimension_semantics=("parallel",),
            vmem_limit_bytes=_vmem_limit_bytes()),
    )(*args)


# --------------------------------------------------------------------------
# Final LayerNorm
# --------------------------------------------------------------------------
def _ln_kernel(x_ref, g_ref, b_ref, o_ref):
    o_ref[0] = _layernorm(x_ref[0].astype(jnp.float32),
                          g_ref[...], b_ref[...]).astype(o_ref.dtype)


def layernorm_forward(x, gamma, beta):
    B, N, C = x.shape
    return pl.pallas_call(
        _ln_kernel,
        out_shape=jax.ShapeDtypeStruct((B, N, C), x.dtype),
        grid_spec=pltpu.PrefetchScalarGridSpec(
            num_scalar_prefetch=0,
            grid=(B,),
            in_specs=[pl.BlockSpec((1, N, C), lambda b: (b, 0, 0)),
                      _wspec((1, C)), _wspec((1, C))],
            out_specs=pl.BlockSpec((1, N, C), lambda b: (b, 0, 0)),
        ),
        compiler_params=pltpu.CompilerParams(
            dimension_semantics=("parallel",),
            vmem_limit_bytes=_vmem_limit_bytes()),
    )(x, gamma, beta)


# --------------------------------------------------------------------------
# Wrapper: full VisionTransformer forward
# --------------------------------------------------------------------------
def extract_patches(x, patch_size):
    # (B, Cin, Himg, Wimg) -> (B, num_patches, Cin*ps*ps), same flattening
    # order (c, i, j) as Conv2d weight .reshape(E, -1).
    B, Cin, Himg, Wimg = x.shape
    hp, wp = Himg // patch_size, Wimg // patch_size
    x = x.reshape(B, Cin, hp, patch_size, wp, patch_size)
    x = x.transpose(0, 2, 4, 1, 3, 5)
    return x.reshape(B, hp * wp, Cin * patch_size * patch_size)


def vit_forward(x_img, kparams, num_heads, patch_size):
    B = x_img.shape[0]
    E = kparams["pos"].shape[-1]
    patches = extract_patches(x_img, patch_size)                          # (B, P, Dp)
    emb = patch_embed_forward(patches, kparams["wpe"], kparams["bpe"])    # (B, P, E)
    cls1 = jnp.broadcast_to(kparams["cls1"], (B, 1, E))
    cls2 = jnp.broadcast_to(kparams["cls2"], (B, 1, E))
    tokens = jnp.concatenate([cls1, cls2, emb], axis=1) + kparams["pos"]  # (B, P+2, E)
    blocks = kparams["blocks"]
    for i in range(0, len(blocks), BLOCKS_PER_CALL):
        tokens = blocks_forward(tokens, blocks[i:i + BLOCKS_PER_CALL], num_heads)
    return layernorm_forward(tokens, kparams["gf"], kparams["bf"])


# --------------------------------------------------------------------------
# Parameter construction + kernel-layout preparation
# --------------------------------------------------------------------------
def init_vit_params(key, *, in_chans, patch_size, num_patches, embed_dim,
                    depth, mlp_hidden):
    patch_dim = in_chans * patch_size * patch_size
    n_tok = num_patches + 2
    keys = jax.random.split(key, 4 + depth)
    p = {
        "wpe": 0.02 * jax.random.normal(keys[0], (patch_dim, embed_dim), jnp.float32),
        "bpe": jnp.zeros((1, embed_dim), jnp.float32),
        "cls1": 0.02 * jax.random.normal(keys[1], (1, 1, embed_dim), jnp.float32),
        "cls2": 0.02 * jax.random.normal(keys[2], (1, 1, embed_dim), jnp.float32),
        "pos": 0.02 * jax.random.normal(keys[3], (1, n_tok, embed_dim), jnp.float32),
        "gf": jnp.ones((1, embed_dim), jnp.float32),
        "bf": jnp.zeros((1, embed_dim), jnp.float32),
        "blocks": [],
    }
    for i in range(depth):
        bk = jax.random.split(keys[4 + i], 6)
        p["blocks"].append({
            "g1": jnp.ones((1, embed_dim), jnp.float32),
            "b1": jnp.zeros((1, embed_dim), jnp.float32),
            "wqkv": 0.02 * jax.random.normal(bk[0], (embed_dim, 3 * embed_dim), jnp.float32),
            "wproj": 0.02 * jax.random.normal(bk[1], (embed_dim, embed_dim), jnp.float32),
            "bproj": 0.01 * jax.random.normal(bk[2], (1, embed_dim), jnp.float32),
            "g2": jnp.ones((1, embed_dim), jnp.float32),
            "b2": jnp.zeros((1, embed_dim), jnp.float32),
            "w1": 0.02 * jax.random.normal(bk[3], (embed_dim, mlp_hidden), jnp.float32),
            "bf1": 0.01 * jax.random.normal(bk[4], (1, mlp_hidden), jnp.float32),
            "w2": 0.02 * jax.random.normal(bk[5], (mlp_hidden, embed_dim), jnp.float32),
            "bf2": jnp.zeros((1, embed_dim), jnp.float32),
        })
    return p


def prepare_kernel_params(params, num_heads):
    """Offline layout prep: scale folded into q columns of the fused qkv weight, bf16 cast."""
    def prep_block(bp):
        C = bp["wqkv"].shape[0]
        Dh = C // num_heads
        scale = Dh ** (-0.5)
        wqkv = jnp.concatenate([bp["wqkv"][:, :C] * scale, bp["wqkv"][:, C:]],
                               axis=1).astype(jnp.bfloat16)     # (C, 3C), scale folded
        return {
            "g1": bp["g1"], "b1": bp["b1"],
            "wqkv": wqkv,
            "wproj": bp["wproj"].astype(jnp.bfloat16),
            "bproj": bp["bproj"],
            "g2": bp["g2"], "b2": bp["b2"],
            "w1": bp["w1"].astype(jnp.bfloat16), "bf1": bp["bf1"],
            "w2": bp["w2"].astype(jnp.bfloat16), "bf2": bp["bf2"],
        }

    return {
        "wpe": params["wpe"].astype(jnp.bfloat16),
        "bpe": params["bpe"],
        "cls1": params["cls1"], "cls2": params["cls2"], "pos": params["pos"],
        "gf": params["gf"], "bf": params["bf"],
        "blocks": [prep_block(bp) for bp in params["blocks"]],
    }


# --------------------------------------------------------------------------
# Pure-JAX f32 reference (PyTorch semantics) for verification
# --------------------------------------------------------------------------
def vit_forward_ref(x_img, params, num_heads, patch_size):
    def ln(v, g, b):
        m = jnp.mean(v, axis=-1, keepdims=True)
        var = jnp.mean((v - m) ** 2, axis=-1, keepdims=True)
        return (v - m) / jnp.sqrt(var + LN_EPS) * g + b

    B = x_img.shape[0]
    E = params["pos"].shape[-1]
    patches = extract_patches(x_img, patch_size)
    emb = patches @ params["wpe"] + params["bpe"]
    cls1 = jnp.broadcast_to(params["cls1"], (B, 1, E))
    cls2 = jnp.broadcast_to(params["cls2"], (B, 1, E))
    x = jnp.concatenate([cls1, cls2, emb], axis=1) + params["pos"]

    for bp in params["blocks"]:
        Bx, N, C = x.shape
        Dh = C // num_heads
        scale = Dh ** (-0.5)
        xn1 = ln(x, bp["g1"], bp["b1"])
        qkv = xn1 @ bp["wqkv"]
        qkv = qkv.reshape(Bx, N, 3, num_heads, Dh).transpose(2, 0, 3, 1, 4)
        q, k, v = qkv[0], qkv[1], qkv[2]
        attn = jax.nn.softmax((q @ jnp.swapaxes(k, -2, -1)) * scale, axis=-1)
        y = (attn @ v).transpose(0, 2, 1, 3).reshape(Bx, N, C)
        y = y @ bp["wproj"] + bp["bproj"]
        x = x + y
        xn2 = ln(x, bp["g2"], bp["b2"])
        h = jax.nn.gelu(xn2 @ bp["w1"] + bp["bf1"], approximate=False)
        x = x + (h @ bp["w2"] + bp["bf2"])

    return ln(x, params["gf"], params["bf"])


if __name__ == "__main__":
    B = 2
    in_chans = 3
    img_size = 16
    patch_size = 4
    embed_dim = 32
    depth = 2
    num_heads = 4
    mlp_hidden = int(embed_dim * 4.0)
    num_patches = (img_size // patch_size) ** 2            # 16 patches -> 18 tokens

    key = jax.random.PRNGKey(0)
    kx, kp = jax.random.split(key)
    x_img = jax.random.normal(kx, (B, in_chans, img_size, img_size), jnp.float32)
    params = init_vit_params(kp, in_chans=in_chans, patch_size=patch_size,
                             num_patches=num_patches, embed_dim=embed_dim,
                             depth=depth, mlp_hidden=mlp_hidden)
    kparams = prepare_kernel_params(params, num_heads)

    out = vit_forward(x_img, kparams, num_heads, patch_size)
    out = jax.block_until_ready(out)

    ref = vit_forward_ref(x_img, params, num_heads, patch_size)
    assert out.shape == (B, num_patches + 2, embed_dim)
    # bf16 MXU operands + approx-reciprocal softmax vs. a pure-f32 reference,
    # amplified by the final LayerNorm -> loosened tolerance.
    err = float(jnp.max(jnp.abs(out - ref)))
    assert err < 8e-2, err

    print("KERNEL_OK")
</pallas_src>

<mosaic_0001>
module attributes {stable_mosaic.version = 11 : i64} {
  func.func @_patch_embed_kernel(%arg0: i32, %arg1: memref<1x16x48xf32, #tpu.memory_space<vmem>>, %arg2: memref<48x32xbf16, #tpu.memory_space<vmem>>, %arg3: memref<1x32xf32, #tpu.memory_space<vmem>>, %arg4: memref<1x16x32xf32, #tpu.memory_space<vmem>>) attributes {dimension_semantics = [#tpu.dimension_semantics<parallel>], iteration_bounds = array<i64: 2>, scalar_prefetch = 0 : i64, scratch_operands = 0 : i64, tpu.core_type = #tpu.core_type<tc>, window_params = [{transform_indices = @transform_0, window_bounds = array<i64: 1, 16, 48>}, {pipeline_mode = #tpu.pipeline_mode<synchronous>, transform_indices = @transform_1, window_bounds = array<i64: 48, 32>}, {pipeline_mode = #tpu.pipeline_mode<synchronous>, transform_indices = @transform_2, window_bounds = array<i64: 1, 32>}, {transform_indices = @transform_3, window_bounds = array<i64: 1, 16, 32>}]} {
    %c0 = arith.constant 0 : index
    %c0_0 = arith.constant 0 : index
    %c0_1 = arith.constant 0 : index
    %0 = vector.load %arg1[%c0, %c0_0, %c0_1] : memref<1x16x48xf32, #tpu.memory_space<vmem>>, vector<1x16x48xf32>
    %1 = vector.shape_cast %0 : vector<1x16x48xf32> to vector<16x48xf32>
    %2 = arith.truncf %1 : vector<16x48xf32> to vector<16x48xbf16>
    %c0_2 = arith.constant 0 : index
    %c0_3 = arith.constant 0 : index
    %3 = vector.load %arg2[%c0_2, %c0_3] : memref<48x32xbf16, #tpu.memory_space<vmem>>, vector<48x32xbf16>
    %cst = arith.constant dense<0.000000e+00> : vector<16x32xf32>
    %4 = tpu.matmul %2, %3, %cst {dimension_numbers = #tpu.dot_dimension_numbers<[1], [0], [0], [1], [0, 0, 1, 1], [], []>} : vector<16x48xbf16>, vector<48x32xbf16>, vector<16x32xf32> -> vector<16x32xf32>
    %c0_4 = arith.constant 0 : index
    %c0_5 = arith.constant 0 : index
    %5 = vector.load %arg3[%c0_4, %c0_5] : memref<1x32xf32, #tpu.memory_space<vmem>>, vector<1x32xf32>
    %6 = vector.broadcast %5 : vector<1x32xf32> to vector<16x32xf32>
    %7 = arith.addf %4, %6 : vector<16x32xf32>
    %c0_6 = arith.constant 0 : index
    %c0_7 = arith.constant 0 : index
    %c0_8 = arith.constant 0 : index
    %8 = vector.load %arg4[%c0_6, %c0_7, %c0_8] : memref<1x16x32xf32, #tpu.memory_space<vmem>>, vector<1x16x32xf32>
    %9 = vector.shape_cast %8 : vector<1x16x32xf32> to vector<16x32xf32>
    %10 = vector.shape_cast %7 : vector<16x32xf32> to vector<1x16x32xf32>
    tpu.vector_store %arg4[%c0_6, %c0_7, %c0_8], %10 {strides = array<i32>} : memref<1x16x32xf32, #tpu.memory_space<vmem>>, vector<1x16x32xf32>,
    return
  }
  func.func @transform_0(%arg0: i32) -> (i32, i32, i32) {
    %c0_i32 = arith.constant 0 : i32
    %c0_i32_0 = arith.constant 0 : i32
    %c0_i32_1 = arith.constant 0 : i32
    return %arg0, %c0_i32, %c0_i32_0 : i32, i32, i32
  }
  func.func @transform_1(%arg0: i32) -> (i32, i32) {
    %c0_i32 = arith.constant 0 : i32
    %c0_i32_0 = arith.constant 0 : i32
    %c0_i32_1 = arith.constant 0 : i32
    return %c0_i32, %c0_i32_0 : i32, i32
  }
  func.func @transform_2(%arg0: i32) -> (i32, i32) {
    %c0_i32 = arith.constant 0 : i32
    %c0_i32_0 = arith.constant 0 : i32
    %c0_i32_1 = arith.constant 0 : i32
    return %c0_i32, %c0_i32_0 : i32, i32
  }
  func.func @transform_3(%arg0: i32) -> (i32, i32, i32) {
    %c0_i32 = arith.constant 0 : i32
    %c0_i32_0 = arith.constant 0 : i32
    %c0_i32_1 = arith.constant 0 : i32
    return %arg0, %c0_i32, %c0_i32_0 : i32, i32, i32
  }
}

</mosaic_0001>

<llo_original>
// kernel: tpu_custom_call.1
$region0: #{tpu_custom_call.1}
  #allocation0 [shape = 'u32[]', space=smem, size = 0x4, offset = 0x4, fixed_abs, tag = 'smem constant byte address 0x4 - core index']
  #allocation1 [shape = 'u32[144,128]{1,0:T(1,128)}', space=vmem, size = 0x12000, scoped, tag = 'internal scratch']
  %s0 = inlined_call_operand.vmem [shape: f32[2,16,48], index: 0, kind: input, shape index: {}]
  %s1 = inlined_call_operand.vmem [shape: bf16[48,32], index: 1, kind: input, shape index: {}]
  %s2 = inlined_call_operand.vmem [shape: f32[1,32], index: 2, kind: input, shape index: {}]
  %s3 = inlined_call_operand.hbm [shape: f32[2,16,32], index: 3, kind: output, shape index: {}]
  %s4 = sld [smem:[#allocation0]]
  $region45: #{tpu_custom_call.1} parent=0
    _
  %s6 = ssub.s32 1, %s4
  %s7 = scalar_select 0, %s6, %s4
  $region1: #{tpu_custom_call.1} parent=0
    #allocation2 [shape = 'u8[16384]{0}', space=vmem, size = 0x4000, scoped, tag = 'output window, operand 0']
    #allocation3 [shape = 's32[2]{0}', space=sflag, size = 0x8, scoped, tag = 'scoped memory for tpu_custom_call.1']
    %8 = vsyncpa [#allocation3], 0
    %s9 = scalar_lea.sflag [#allocation3], 1
    %10 = vsyncpa %s9, 0
    loop: start=0, step=1, limit=4
    $region2: #{tpu_custom_call.1} parent=1 // loop_pre_header
      _
    $region3: #{tpu_custom_call.1} parent=1 // loop_header
      %s12 = sphi 0, %s16
      %p13 = scmp.ge.s32.totalorder %s12, 4
      %s22 = sphi 0, %s24
      %s25 = sphi 0, %s22
      %s26 = sphi 0, %s25
      %s42 = sphi 0, %s26
      %s46 = sphi 0, %s46
      %s48 = sphi 0, %s46
      %s49 = sphi 0, %s48
      %s63 = sphi 0, %s49
      %s67 = sphi 0, %s67
      %s69 = sphi 0, %s67
      %s70 = sphi 0, %s69
      %s84 = sphi 0, %s70
      %s90 = sphi 0, %s92
      %s93 = sphi 0, %s90
      %s94 = sphi 0, %s93
      %s110 = sphi 0, %s94
    $region4: #{tpu_custom_call.1} parent=1 // loop_header_branch
      %15 = sbr.rel (%p13) target = $region8
    $region5: #{tpu_custom_call.1} parent=1 // loop_body
      %s17 = ssub.s32 %s12, 1
      %s18 = ssub.s32 %s12, 2
      %s19 = sadd.s32 %s12, 1
      %s20 = ssub.s32 %s12, %s19
      %p21 = scmp.eq.s32.totalorder %s20, 0
      %s23 = sadd.s32 %s22, 1
      %s24 = scalar_select %p21, %s22, %s23
      %p27 = pneg %p21
      %p28 = scmp.eq.s32.totalorder %s12, 1
      %p29 = por %p27, %p28
      %p30 = scmp.ne.s32.totalorder %s22, %s25
      %p31 = scmp.eq.s32.totalorder %s12, 0
      %p32 = por %p30, %p31
      %p33 = scmp.ne.s32.totalorder %s22, %s25
      %p34 = scmp.eq.s32.totalorder %s17, 1
      %p35 = por %p33, %p34
      %p36 = scmp.ne.s32.totalorder %s25, %s26
      %p37 = scmp.eq.s32.totalorder %s17, 0
      %p38 = por %p36, %p37
      %p39 = scmp.ne.s32.totalorder %s25, %s26
      %p40 = scmp.eq.s32.totalorder %s18, 1
      %p41 = por %p39, %p40
      %p43 = scmp.ne.s32.totalorder %s26, %s42
      %p44 = scmp.eq.s32.totalorder %s18, 0
      %p45 = por %p43, %p44
      %s47 = sadd.s32 %s46, 1
      %p50 = scmp.eq.s32.totalorder %s12, 1
      %p51 = scmp.ne.s32.totalorder %s46, %s48
      %p52 = scmp.eq.s32.totalorder %s12, 0
      %p53 = por %p51, %p52
      %p54 = scmp.ne.s32.totalorder %s46, %s48
      %p55 = scmp.eq.s32.totalorder %s17, 1
      %p56 = por %p54, %p55
      %p57 = scmp.ne.s32.totalorder %s48, %s49
      %p58 = scmp.eq.s32.totalorder %s17, 0
      %p59 = por %p57, %p58
      %p60 = scmp.ne.s32.totalorder %s48, %s49
      %p61 = scmp.eq.s32.totalorder %s18, 1
      %p62 = por %p60, %p61
      %p64 = scmp.ne.s32.totalorder %s49, %s63
      %p65 = scmp.eq.s32.totalorder %s18, 0
      %p66 = por %p64, %p65
      %s68 = sadd.s32 %s67, 1
      %p71 = scmp.eq.s32.totalorder %s12, 1
      %p72 = scmp.ne.s32.totalorder %s67, %s69
      %p73 = scmp.eq.s32.totalorder %s12, 0
      %p74 = por %p72, %p73
      %p75 = scmp.ne.s32.totalorder %s67, %s69
      %p76 = scmp.eq.s32.totalorder %s17, 1
      %p77 = por %p75, %p76
      %p78 = scmp.ne.s32.totalorder %s69, %s70
      %p79 = scmp.eq.s32.totalorder %s17, 0
      %p80 = por %p78, %p79
      %p81 = scmp.ne.s32.totalorder %s69, %s70
      %p82 = scmp.eq.s32.totalorder %s18, 1
      %p83 = por %p81, %p82
      %p85 = scmp.ne.s32.totalorder %s70, %s84
      %p86 = scmp.eq.s32.totalorder %s18, 0
      %p87 = por %p85, %p86
      %s88 = ssub.s32 %s12, %s19
      %p89 = scmp.eq.s32.totalorder %s88, 0
      %s91 = sadd.s32 %s90, 1
      %s92 = scalar_select %p89, %s90, %s91
      %p95 = pneg %p89
      %p96 = scmp.eq.s32.totalorder %s12, 1
      %p97 = por %p95, %p96
      %p98 = scmp.ne.s32.totalorder %s90, %s93
      %p99 = scmp.eq.s32.totalorder %s12, 0
      %p100 = por %p98, %p99
      %p101 = scmp.ne.s32.totalorder %s90, %s93
      %p102 = scmp.eq.s32.totalorder %s17, 1
      %p103 = por %p101, %p102
      %p104 = scmp.ne.s32.totalorder %s93, %s94
      %p105 = scmp.eq.s32.totalorder %s17, 0
      %p106 = por %p104, %p105
      %p107 = scmp.ne.s32.totalorder %s93, %s94
      %p108 = scmp.eq.s32.totalorder %s18, 1
      %p109 = por %p107, %p108
      %p111 = scmp.ne.s32.totalorder %s94, %s110
      %p112 = scmp.eq.s32.totalorder %s18, 0
      %p113 = por %p111, %p112
      %p114 = scmp.le.s32.totalorder 1, %s12
      %p115 = scmp.lt.s32.totalorder %s12, 3
      %p116 = pnand %p114, %p115
      %p117 = pneg %p116
      // Predicated region
      $region9: #{tpu_custom_call.1} parent=5 // pred_check
        _
      $region10: #{tpu_custom_call.1} parent=5 // pred_check_branch
        %119 = sbr.rel (%p116) target = $region12
      $region11: #{tpu_custom_call.1} parent=5 // pred_region
        %s120 = ssub.s32 %s12, 1
        // Predicated region
        $region13: #{tpu_custom_call.1} parent=11 // pred_check
          %p121 = pneg %p59
        $region14: #{tpu_custom_call.1} parent=11 // pred_check_branch
          %123 = sbr.rel (%p121) target = $region16
        $region15: #{tpu_custom_call.1} parent=11 // pred_region
          _
        $region16: #{tpu_custom_call.1} parent=11 // pred_fallthru
          _
        // Predicated region
        $region17: #{tpu_custom_call.1} parent=11 // pred_check
          %p124 = pneg %p80
        $region18: #{tpu_custom_call.1} parent=11 // pred_check_branch
          %126 = sbr.rel (%p124) target = $region20
        $region19: #{tpu_custom_call.1} parent=11 // pred_region
          _
        $region20: #{tpu_custom_call.1} parent=11 // pred_fallthru
          _
      $region12: #{tpu_custom_call.1} parent=5 // pred_fallthru
        _
      %p127 = scmp.lt.s32.totalorder %s12, 2
      // Predicated region
      $region21: #{tpu_custom_call.1} parent=5 // pred_check
        %p128 = pneg %p127
      $region22: #{tpu_custom_call.1} parent=5 // pred_check_branch
        %130 = sbr.rel (%p128) target = $region24
      $region23: #{tpu_custom_call.1} parent=5 // pred_region
        // Predicated region
        $region25: #{tpu_custom_call.1} parent=23 // pred_check
          %p131 = pneg %p32
        $region26: #{tpu_custom_call.1} parent=23 // pred_check_branch
          %133 = sbr.rel (%p131) target = $region28
        $region27: #{tpu_custom_call.1} parent=23 // pred_region
          %p134 = scmp.lt.s32.totalorder %s12, 1
          %s135 = scalar_select %p134, %s12, 1
          %s136 = smul.addr %s135, 2
          %s137 = smul.addr %s136, 8
          %s138 = scalar_lea.vmem %s0, %s137
        $region28: #{tpu_custom_call.1} parent=23 // pred_fallthru
          _
      $region24: #{tpu_custom_call.1} parent=5 // pred_fallthru
        _
      %p139 = scmp.le.s32.totalorder 1, %s12
      %p140 = scmp.lt.s32.totalorder %s12, 3
      %p141 = pnand %p139, %p140
      %p142 = pneg %p141
      // Predicated region
      $region29: #{tpu_custom_call.1} parent=5 // pred_check
        _
      $region30: #{tpu_custom_call.1} parent=5 // pred_check_branch
        %144 = sbr.rel (%p141) target = $region32
      $region31: #{tpu_custom_call.1} parent=5 // pred_region
        %s145 = ssub.s32 %s12, 1
        %p146 = scmp.lt.s32.totalorder %s17, 1
        %s147 = scalar_select %p146, %s17, 1
        %s148 = smul.addr %s147, 2
        %s149 = smul.addr %s148, 8
        %s150 = scalar_lea.vmem %s0, %s149
        %p151 = pneg %p38
        %p152 = pneg %p35
        %p153 = pneg %p59
        %p154 = pneg %p56
        %p155 = pneg %p80
        %p156 = pneg %p77
        %p157 = pneg %p106
        %p158 = pneg %p103
        %s159 = sand.u32 %s93, 1
        %s160 = scalar_lea.sflag [#allocation3], %s159
        %s161 = sand.u32 %s93, 1
        %s162 = smul.addr %s161, 16
        %s163 = scalar_lea.vmem [#allocation2], %s162
        %p164 = scmp.lt.s32.totalorder %s17, 1
        %s165 = scalar_select %p164, %s17, 1
        %s166 = smul.addr %s165, 2
        %s167 = smul.addr %s166, 8
        %s168 = scalar_lea.vmem %s0, %s167
        %v170 = vld [vmem:[%s168] sm:$0xff]
        %v171 = vld [vmem:[%s168 + $0x8] sm:$0xff]
        %v172 = vpack.c.bf16 %v171, %v170
        %v173 = vld [vmem:[%s1] sm:$0xf]
        %v174 = vld [vmem:[%s1 + $0x4] sm:$0xf]
        %v175 = vld [vmem:[%s1 + $0x8] sm:$0xf]
        %v176 = vld [vmem:[%s1 + $0xc] sm:$0xf]
        %v177 = vld [vmem:[%s1 + $0x10] sm:$0xf]
        %v178 = vld [vmem:[%s1 + $0x14] sm:$0xf]
        %v179 = vld [vmem:[%s2] sm:$0x1]
        %v181 = vlaneseq
        %v182 = vshrl.u32 %v181, 7
        %v183 = vsub.s32 0, %v182
        %v184 = vrot.slane %v179, %v183
        %v192 = vunpack.c.l.b16 %v173
        %v193 = vunpack.c.l.b16 %v174
        %v194 = vunpack.c.l.b16 %v175
        %v195 = vunpack.c.l.b16 %v176
        %v196 = vunpack.c.l.b16 %v177
        %v197 = vunpack.c.l.b16 %v178
        %v198 = vpack.c.b16 %v193, %v192
        %v199 = vpack.c.b16 %v195, %v194
        %v200 = vpack.c.b16 %v197, %v196
        %vm204 = vcmask 392192
        %v206 = vsel %vm204, %v172, 0
        %208 = vmatprep.subr.bf16.mxu0 0
        %209 = vmatpush1.bf16.msra.mxu0 %v198
        %210 = vmatprep.subr.bf16.mxu0 0
        %211 = vmatpush1.bf16.msra.mxu0 %v199
        %212 = vmatprep.subr.bf16.mxu0 0
        %213 = vmatpush1.bf16.msra.mxu0 %v200
        %214 = vmatprep.subr.bf16.mxu0 0
        %215 = vmatpush1.bf16.msra.mxu0 0
        %216 = vmatprep.subr.bf16.mxu0 0
        %217 = vmatpush1.bf16.msra.mxu0 0
        %218 = vmatprep.subr.bf16.mxu0 0
        %219 = vmatpush1.bf16.msra.mxu0 0
        %220 = vmatprep.subr.bf16.mxu0 0
        %221 = vmatpush1.bf16.msra.mxu0 0
        %222 = vmatprep.subr.bf16.mxu0 0
        %223 = vmatpush1.bf16.msra.mxu0 0
        %224 = vmatprep.subr.bf16.mxu0 0
        %225 = vmatpush1.bf16.msra.mxu0 0
        %226 = vmatprep.subr.bf16.mxu0 0
        %227 = vmatpush1.bf16.msra.mxu0 0
        %228 = vmatprep.subr.bf16.mxu0 0
        %229 = vmatpush1.bf16.msra.mxu0 0
        %230 = vmatprep.subr.bf16.mxu0 0
        %231 = vmatpush1.bf16.msra.mxu0 0
        %232 = vmatprep.subr.bf16.mxu0 0
        %233 = vmatpush1.bf16.msra.mxu0 0
        %234 = vmatprep.subr.bf16.mxu0 0
        %235 = vmatpush1.bf16.msra.mxu0 0
        %236 = vmatprep.subr.bf16.mxu0 0
        %237 = vmatpush1.bf16.msra.mxu0 0
        %238 = vmatprep.subr.bf16.mxu0 0
        %239 = vmatpush1.bf16.msra.mxu0 0
        %240 = vmatprep.mubr.bf16.mxu0 0
        %241 = vmatmul.mubr.bf16.gmra.mrb[0].mxu0 %v206
        %v242 = vpop.f32.mrb[0].mxu0
        %v243 = vadd.f32 %v184, %v242
        %v244 = vpop.f32.mrb[0].mxu0
        %v245 = vpop.f32.mrb[0].mxu0
        %v246 = vadd.f32 %v184, %v245
        %v247 = vpop.f32.mrb[0].mxu0
        %248 = vdwg.mxu0
        %vm249 = vcmask 261120
        %250 = vst.msk [vmem:[%s163] sm:$0xff] %vm249, %v243
        %251 = vst.msk [vmem:[%s163 + $0x8] sm:$0xff] %vm249, %v246
        %s252 = sand.u32 %s93, 1
        %s253 = scalar_lea.sflag [#allocation3], %s252
        %s254 = sand.u32 %s93, 1
        %s255 = smul.addr %s254, 16
        %s256 = scalar_lea.vmem [#allocation2], %s255
        // Predicated region
        $region33: #{tpu_custom_call.1} parent=31 // pred_check
          %p257 = pneg %p103
        $region34: #{tpu_custom_call.1} parent=31 // pred_check_branch
          %259 = sbr.rel (%p257) target = $region36
        $region35: #{tpu_custom_call.1} parent=31 // pred_region
          %s261 = ssub.s32 256, 256
          %262 = vsyncadd %s253, %s261
          %s263 = smul.addr %s17, 2
          %s264 = smul.addr %s263, 128
          %s265 = scalar_lea.hbm %s3, %s264
          %s266 = sshll.u32 %s256, 4
          %s267 = int_to_ptr.vmem [resolvable:$true] %s266
          %272 = dma.vmem_to_hbm [thread:$0]  %s267, 256, %s265, %s253, 128, 128, 8
        $region36: #{tpu_custom_call.1} parent=31 // pred_fallthru
          _
      $region32: #{tpu_custom_call.1} parent=5 // pred_fallthru
        _
      %p273 = scmp.le.s32.totalorder 2, %s12
      // Predicated region
      $region37: #{tpu_custom_call.1} parent=5 // pred_check
        %p274 = pneg %p273
      $region38: #{tpu_custom_call.1} parent=5 // pred_check_branch
        %276 = sbr.rel (%p274) target = $region40
      $region39: #{tpu_custom_call.1} parent=5 // pred_region
        %s277 = ssub.s32 %s12, 2
        // Predicated region
        $region41: #{tpu_custom_call.1} parent=39 // pred_check
          %p278 = pneg %p109
        $region42: #{tpu_custom_call.1} parent=39 // pred_check_branch
          %280 = sbr.rel (%p278) target = $region44
        $region43: #{tpu_custom_call.1} parent=39 // pred_region
          %s281 = sand.u32 %s94, 1
          %s282 = scalar_lea.sflag [#allocation3], %s281
          %s283 = sand.u32 %s94, 1
          %s284 = smul.addr %s283, 16
          %s285 = scalar_lea.vmem [#allocation2], %s284
          %286 = dma.done %s282, 256
        $region44: #{tpu_custom_call.1} parent=39 // pred_fallthru
          _
      $region40: #{tpu_custom_call.1} parent=5 // pred_fallthru
        _
    $region6: #{tpu_custom_call.1} parent=1 // loop_footer
      %s16 = sadd.s32 1, %s12
    $region7: #{tpu_custom_call.1} parent=1 // loop_footer_branch
      %11 = sbr.rel target = $region3
    $region8: #{tpu_custom_call.1} parent=1 // loop_exit
      _
    %287 = vsyncpa [#allocation3], 1
    %s288 = scalar_lea.sflag [#allocation3], 1
    %289 = vsyncpa %s288, 1

</llo_original>
